<compile_context>
chip_gen: v6e
topology: v6e:2x2x1
jax: 0.10.0
libtpu: 0.0.40
codegen_flags: <defaults>
</compile_context>

<pallas_src>
import functools

import jax
import jax.numpy as jnp
from jax.experimental import pallas as pl
from jax.experimental.pallas import tpu as pltpu


def _round_up(x, m):
    return (x + m - 1) // m * m


# ----------------------------------------------------------------------------
# Pallas kernel: whole Critic forward pass for one batch tile
# ----------------------------------------------------------------------------
def _critic_kernel(s_ref, a_ref, p_ref, o_ref, *,
                   o_w1, o_w2s, o_w2a, o_w3, o_w4, o_tail, nSp, nAp, P):
    f32 = jnp.float32

    # ---- unpack parameter slab (static, sublane-aligned slices) ------------
    w1 = p_ref[o_w1:o_w1 + nSp, :]          # (nSp, P)
    w2s = p_ref[o_w2s:o_w2s + P, :]         # (P,   P)
    w2a = p_ref[o_w2a:o_w2a + nAp, :]       # (nAp, P)
    w3 = p_ref[o_w3:o_w3 + P, :]            # (P,   P)
    w4 = p_ref[o_w4:o_w4 + P, :]            # (P,   P)
    tail = p_ref[o_tail:o_tail + 8, :]      # (8, P): w5 row, b1..b4, b5 row
    w5r = tail[0:1, :]                      # (1, P)
    b1 = tail[1:2, :]
    b2 = tail[2:3, :]
    b3 = tail[3:4, :]
    b4 = tail[4:5, :]
    # b5 is replicated across all P lanes of row 5; a lane-max recovers the
    # scalar (exact) without needing a 1-lane slice.
    b5 = jnp.max(tail[5:6, :], axis=-1, keepdims=True)   # (1, 1)

    # ---- layer 1: Linear(nS, H0) + ReLU ------------------------------------
    x = jnp.dot(s_ref[...], w1, preferred_element_type=f32) + b1
    x = jnp.maximum(x, 0.0)

    # ---- layer 2: Linear(H0 + nA, H1) + ReLU  (concat fused) ---------------
    x = (jnp.dot(x, w2s, preferred_element_type=f32)
         + jnp.dot(a_ref[...], w2a, preferred_element_type=f32) + b2)
    x = jnp.maximum(x, 0.0)

    # ---- layer 3: Linear(H1, H2) + ReLU ------------------------------------
    x = jnp.dot(x, w3, preferred_element_type=f32) + b3
    x = jnp.maximum(x, 0.0)

    # ---- layer 4: Linear(H2, H3) + ReLU ------------------------------------
    x = jnp.dot(x, w4, preferred_element_type=f32) + b4
    x = jnp.maximum(x, 0.0)

    # ---- output layer: Linear(H3, 1) as VPU mul + XLU lane-reduce ----------
    o_ref[...] = jnp.sum(x * w5r, axis=-1, keepdims=True) + b5


# ----------------------------------------------------------------------------
# Host-side parameter packing into a single zero-padded slab
# ----------------------------------------------------------------------------
def pack_critic_params(params, nS, nA, hidden_dims=(128, 64, 64, 32)):
    """Pack the 11 natural parameter arrays into one zero-padded [R, P] slab."""
    (w1, b1, w2s, w2a, b2, w3, b3, w4, b4, w5, b5) = params
    P = _round_up(max(hidden_dims), 128)      # lane-padded hidden width
    nSp = _round_up(nS, 8)
    nAp = _round_up(nA, 8)

    def padto(a, rows, cols):
        a = jnp.asarray(a, jnp.float32)
        return jnp.pad(a, ((0, rows - a.shape[0]), (0, cols - a.shape[1])))

    b5_row = jnp.full((1, P), jnp.asarray(b5, jnp.float32)[0, 0])

    blocks = [
        padto(w1, nSp, P),                    # (nSp, P)
        padto(w2s, P, P),                     # (P, P)
        padto(w2a, nAp, P),                   # (nAp, P)
        padto(w3, P, P),                      # (P, P)
        padto(w4, P, P),                      # (P, P)
        jnp.concatenate([                     # tail: (8, P)
            padto(w5.T, 1, P),                #   row 0: w5 as a row
            padto(b1, 1, P), padto(b2, 1, P), #   rows 1..4: biases (lane-padded)
            padto(b3, 1, P), padto(b4, 1, P),
            b5_row,                           #   row 5: b5 replicated across lanes
            jnp.zeros((2, P), jnp.float32),   #   rows 6..7: pad to 8 rows
        ], axis=0),
    ]

    offs, r = {}, 0
    for name, blk in zip(("w1", "w2s", "w2a", "w3", "w4", "tail"), blocks):
        offs[name] = r
        r += blk.shape[0]
    slab = jnp.concatenate(blocks, axis=0)    # (R, P), all offsets multiples of 8

    meta = dict(o_w1=offs["w1"], o_w2s=offs["w2s"], o_w2a=offs["w2a"],
                o_w3=offs["w3"], o_w4=offs["w4"], o_tail=offs["tail"],
                nSp=nSp, nAp=nAp, P=P, nS=nS, nA=nA)
    return slab, meta


# ----------------------------------------------------------------------------
# Forward-pass factory (static metadata baked in, batch-tiled grid)
# ----------------------------------------------------------------------------
def make_critic_forward(meta, *, max_tile_b=512):
    nS, nA = meta["nS"], meta["nA"]
    nSp, nAp, P = meta["nSp"], meta["nAp"], meta["P"]

    kernel = functools.partial(
        _critic_kernel,
        o_w1=meta["o_w1"], o_w2s=meta["o_w2s"], o_w2a=meta["o_w2a"],
        o_w3=meta["o_w3"], o_w4=meta["o_w4"], o_tail=meta["o_tail"],
        nSp=nSp, nAp=nAp, P=P)

    @jax.jit
    def forward(state, action, slab):
        B = state.shape[0]
        tb = min(max_tile_b, _round_up(B, 8))   # batch tile, multiple of 8
        state_p = jnp.pad(jnp.asarray(state, jnp.float32),
                          ((0, 0), (0, nSp - nS)))
        action_p = jnp.pad(jnp.asarray(action, jnp.float32),
                           ((0, 0), (0, nAp - nA)))
        R = slab.shape[0]

        grid_spec = pltpu.PrefetchScalarGridSpec(
            num_scalar_prefetch=0,
            grid=(pl.cdiv(B, tb),),
            in_specs=[
                pl.BlockSpec((tb, nSp), lambda i: (i, 0)),
                pl.BlockSpec((tb, nAp), lambda i: (i, 0)),
                # Constant index_map -> the packed weight slab is fetched once
                # and stays VMEM-resident across all batch tiles.
                pl.BlockSpec((R, P), lambda i: (0, 0)),
            ],
            out_specs=pl.BlockSpec((tb, 1), lambda i: (i, 0)),
        )
        return pl.pallas_call(
            kernel,
            out_shape=jax.ShapeDtypeStruct((B, 1), jnp.float32),
            grid_spec=grid_spec,
            compiler_params=pltpu.CompilerParams(
                dimension_semantics=("parallel",)),
        )(state_p, action_p, slab)

    return forward


# ----------------------------------------------------------------------------
# Deterministic parameter construction (mirrors the module's shapes / init law)
# ----------------------------------------------------------------------------
def make_critic_params(key, nS, nA, hidden_dims=(128, 64, 64, 32)):
    H0, H1, H2, H3 = hidden_dims

    def uniform(key, shape, lim):
        return jax.random.uniform(key, shape, jnp.float32, minval=-lim, maxval=lim)

    keys = jax.random.split(key, 10)

    # PyTorch Linear weight is [out, in]; we store transposed [in, out].
    # hidden_init() in the spec uses weight.size()[0] == out_features.
    w1 = uniform(keys[0], (nS, H0), 1.0 / jnp.sqrt(H0))
    b1 = uniform(keys[1], (1, H0), 1.0 / jnp.sqrt(nS))

    w2 = uniform(keys[2], (H0 + nA, H1), 1.0 / jnp.sqrt(H1))
    w2s, w2a = w2[:H0], w2[H0:]                       # split for fused concat
    b2 = uniform(keys[3], (1, H1), 1.0 / jnp.sqrt(H0 + nA))

    w3 = uniform(keys[4], (H1, H2), 1.0 / jnp.sqrt(H2))
    b3 = uniform(keys[5], (1, H2), 1.0 / jnp.sqrt(H1))

    w4 = uniform(keys[6], (H2, H3), 1.0 / jnp.sqrt(H3))
    b4 = uniform(keys[7], (1, H3), 1.0 / jnp.sqrt(H2))

    w5 = uniform(keys[8], (H3, 1), 0.003)
    b5 = uniform(keys[9], (1, 1), 1.0 / jnp.sqrt(H3))

    return (w1, b1, w2s, w2a, b2, w3, b3, w4, b4, w5, b5)


# Pure-JAX reference of the PyTorch forward (for correctness check).
def critic_reference(state, action, params):
    (w1, b1, w2s, w2a, b2, w3, b3, w4, b4, w5, b5) = params
    xs = jax.nn.relu(state @ w1 + b1)
    x = jnp.concatenate([xs, action], axis=-1)
    w2 = jnp.concatenate([w2s, w2a], axis=0)
    x = jax.nn.relu(x @ w2 + b2)
    x = jax.nn.relu(x @ w3 + b3)
    x = jax.nn.relu(x @ w4 + b4)
    return x @ w5 + b5


# ----------------------------------------------------------------------------
if __name__ == "__main__":
    B, nS, nA = 8, 16, 4
    hidden_dims = (128, 64, 64, 32)

    root = jax.random.PRNGKey(0)
    k_params, k_state, k_action = jax.random.split(root, 3)

    params = make_critic_params(k_params, nS, nA, hidden_dims)
    slab, meta = pack_critic_params(params, nS, nA, hidden_dims)
    critic_forward = make_critic_forward(meta)

    state = jax.random.normal(k_state, (B, nS), jnp.float32)
    action = jax.random.uniform(k_action, (B, nA), jnp.float32, minval=-1.0, maxval=1.0)

    q = critic_forward(state, action, slab)
    q = jax.block_until_ready(q)

    q_ref = critic_reference(state, action, params)
    assert q.shape == (B, 1)
    assert jnp.allclose(q, q_ref, atol=1e-5, rtol=1e-5), "mismatch vs reference"

    print("KERNEL_OK")
</pallas_src>

<mosaic_0001>
module attributes {stable_mosaic.version = 11 : i64} {
  func.func @_critic_kernel(%arg0: i32, %arg1: memref<8x16xf32, #tpu.memory_space<vmem>>, %arg2: memref<8x8xf32, #tpu.memory_space<vmem>>, %arg3: memref<416x128xf32, #tpu.memory_space<vmem>>, %arg4: memref<8x1xf32, #tpu.memory_space<vmem>>) attributes {dimension_semantics = [#tpu.dimension_semantics<parallel>], iteration_bounds = array<i64: 1>, scalar_prefetch = 0 : i64, scratch_operands = 0 : i64, tpu.core_type = #tpu.core_type<tc>, window_params = [{transform_indices = @transform_0, window_bounds = array<i64: 8, 16>}, {transform_indices = @transform_1, window_bounds = array<i64: 8, 8>}, {pipeline_mode = #tpu.pipeline_mode<synchronous>, transform_indices = @transform_2, window_bounds = array<i64: 416, 128>}, {transform_indices = @transform_3, window_bounds = array<i64: 8, 1>}]} {
    %c0 = arith.constant 0 : index
    %c0_0 = arith.constant 0 : index
    %0 = vector.load %arg3[%c0, %c0_0] : memref<416x128xf32, #tpu.memory_space<vmem>>, vector<16x128xf32>
    %c16 = arith.constant 16 : index
    %c0_1 = arith.constant 0 : index
    %1 = vector.load %arg3[%c16, %c0_1] : memref<416x128xf32, #tpu.memory_space<vmem>>, vector<128x128xf32>
    %c144 = arith.constant 144 : index
    %c0_2 = arith.constant 0 : index
    %2 = vector.load %arg3[%c144, %c0_2] : memref<416x128xf32, #tpu.memory_space<vmem>>, vector<8x128xf32>
    %c152 = arith.constant 152 : index
    %c0_3 = arith.constant 0 : index
    %3 = vector.load %arg3[%c152, %c0_3] : memref<416x128xf32, #tpu.memory_space<vmem>>, vector<128x128xf32>
    %c280 = arith.constant 280 : index
    %c0_4 = arith.constant 0 : index
    %4 = vector.load %arg3[%c280, %c0_4] : memref<416x128xf32, #tpu.memory_space<vmem>>, vector<128x128xf32>
    %c408 = arith.constant 408 : index
    %c0_5 = arith.constant 0 : index
    %5 = vector.load %arg3[%c408, %c0_5] : memref<416x128xf32, #tpu.memory_space<vmem>>, vector<8x128xf32>
    %6 = vector.extract_strided_slice %5 {offsets = [0, 0], sizes = [1, 128], strides = [1, 1]} : vector<8x128xf32> to vector<1x128xf32>
    %7 = vector.extract_strided_slice %5 {offsets = [1, 0], sizes = [1, 128], strides = [1, 1]} : vector<8x128xf32> to vector<1x128xf32>
    %8 = vector.extract_strided_slice %5 {offsets = [2, 0], sizes = [1, 128], strides = [1, 1]} : vector<8x128xf32> to vector<1x128xf32>
    %9 = vector.extract_strided_slice %5 {offsets = [3, 0], sizes = [1, 128], strides = [1, 1]} : vector<8x128xf32> to vector<1x128xf32>
    %10 = vector.extract_strided_slice %5 {offsets = [4, 0], sizes = [1, 128], strides = [1, 1]} : vector<8x128xf32> to vector<1x128xf32>
    %11 = vector.extract_strided_slice %5 {offsets = [5, 0], sizes = [1, 128], strides = [1, 1]} : vector<8x128xf32> to vector<1x128xf32>
    %cst = arith.constant dense<0xFF800000> : vector<1xf32>
    %12 = vector.multi_reduction <maximumf>, %11, %cst [1] : vector<1x128xf32> to vector<1xf32>
    %13 = vector.shape_cast %12 : vector<1xf32> to vector<1x1xf32>
    %c0_6 = arith.constant 0 : index
    %c0_7 = arith.constant 0 : index
    %14 = vector.load %arg1[%c0_6, %c0_7] : memref<8x16xf32, #tpu.memory_space<vmem>>, vector<8x16xf32>
    %cst_8 = arith.constant dense<0.000000e+00> : vector<8x128xf32>
    %15 = tpu.matmul %14, %0, %cst_8 {dimension_numbers = #tpu.dot_dimension_numbers<[1], [0], [0], [1], [0, 0, 1, 1], [], []>} : vector<8x16xf32>, vector<16x128xf32>, vector<8x128xf32> -> vector<8x128xf32>
    %16 = vector.broadcast %7 : vector<1x128xf32> to vector<8x128xf32>
    %17 = arith.addf %15, %16 : vector<8x128xf32>
    %cst_9 = arith.constant 0.000000e+00 : f32
    %18 = vector.broadcast %cst_9 : f32 to vector<8x128xf32>
    %19 = arith.maximumf %17, %18 : vector<8x128xf32>
    %cst_10 = arith.constant dense<0.000000e+00> : vector<8x128xf32>
    %20 = tpu.matmul %19, %1, %cst_10 {dimension_numbers = #tpu.dot_dimension_numbers<[1], [0], [0], [1], [0, 0, 1, 1], [], []>} : vector<8x128xf32>, vector<128x128xf32>, vector<8x128xf32> -> vector<8x128xf32>
    %c0_11 = arith.constant 0 : index
    %c0_12 = arith.constant 0 : index
    %21 = vector.load %arg2[%c0_11, %c0_12] : memref<8x8xf32, #tpu.memory_space<vmem>>, vector<8x8xf32>
    %cst_13 = arith.constant dense<0.000000e+00> : vector<8x128xf32>
    %22 = tpu.matmul %21, %2, %cst_13 {dimension_numbers = #tpu.dot_dimension_numbers<[1], [0], [0], [1], [0, 0, 1, 1], [], []>} : vector<8x8xf32>, vector<8x128xf32>, vector<8x128xf32> -> vector<8x128xf32>
    %23 = arith.addf %20, %22 : vector<8x128xf32>
    %24 = vector.broadcast %8 : vector<1x128xf32> to vector<8x128xf32>
    %25 = arith.addf %23, %24 : vector<8x128xf32>
    %cst_14 = arith.constant 0.000000e+00 : f32
    %26 = vector.broadcast %cst_14 : f32 to vector<8x128xf32>
    %27 = arith.maximumf %25, %26 : vector<8x128xf32>
    %cst_15 = arith.constant dense<0.000000e+00> : vector<8x128xf32>
    %28 = tpu.matmul %27, %3, %cst_15 {dimension_numbers = #tpu.dot_dimension_numbers<[1], [0], [0], [1], [0, 0, 1, 1], [], []>} : vector<8x128xf32>, vector<128x128xf32>, vector<8x128xf32> -> vector<8x128xf32>
    %29 = vector.broadcast %9 : vector<1x128xf32> to vector<8x128xf32>
    %30 = arith.addf %28, %29 : vector<8x128xf32>
    %cst_16 = arith.constant 0.000000e+00 : f32
    %31 = vector.broadcast %cst_16 : f32 to vector<8x128xf32>
    %32 = arith.maximumf %30, %31 : vector<8x128xf32>
    %cst_17 = arith.constant dense<0.000000e+00> : vector<8x128xf32>
    %33 = tpu.matmul %32, %4, %cst_17 {dimension_numbers = #tpu.dot_dimension_numbers<[1], [0], [0], [1], [0, 0, 1, 1], [], []>} : vector<8x128xf32>, vector<128x128xf32>, vector<8x128xf32> -> vector<8x128xf32>
    %34 = vector.broadcast %10 : vector<1x128xf32> to vector<8x128xf32>
    %35 = arith.addf %33, %34 : vector<8x128xf32>
    %cst_18 = arith.constant 0.000000e+00 : f32
    %36 = vector.broadcast %cst_18 : f32 to vector<8x128xf32>
    %37 = arith.maximumf %35, %36 : vector<8x128xf32>
    %38 = vector.broadcast %6 : vector<1x128xf32> to vector<8x128xf32>
    %39 = arith.mulf %37, %38 : vector<8x128xf32>
    %cst_19 = arith.constant dense<0.000000e+00> : vector<8xf32>
    %40 = vector.multi_reduction <add>, %39, %cst_19 [1] : vector<8x128xf32> to vector<8xf32>
    %41 = vector.shape_cast %40 : vector<8xf32> to vector<8x1xf32>
    %42 = vector.broadcast %13 : vector<1x1xf32> to vector<8x1xf32>
    %43 = arith.addf %41, %42 : vector<8x1xf32>
    %c0_20 = arith.constant 0 : index
    %c0_21 = arith.constant 0 : index
    %44 = vector.load %arg4[%c0_20, %c0_21] : memref<8x1xf32, #tpu.memory_space<vmem>>, vector<8x1xf32>
    tpu.vector_store %arg4[%c0_20, %c0_21], %43 {strides = array<i32>} : memref<8x1xf32, #tpu.memory_space<vmem>>, vector<8x1xf32>,
    return
  }
  func.func @transform_0(%arg0: i32) -> (i32, i32) {
    %c0_i32 = arith.constant 0 : i32
    %c0_i32_0 = arith.constant 0 : i32
    return %arg0, %c0_i32 : i32, i32
  }
  func.func @transform_1(%arg0: i32) -> (i32, i32) {
    %c0_i32 = arith.constant 0 : i32
    %c0_i32_0 = arith.constant 0 : i32
    return %arg0, %c0_i32 : i32, i32
  }
  func.func @transform_2(%arg0: i32) -> (i32, i32) {
    %c0_i32 = arith.constant 0 : i32
    %c0_i32_0 = arith.constant 0 : i32
    %c0_i32_1 = arith.constant 0 : i32
    return %c0_i32, %c0_i32_0 : i32, i32
  }
  func.func @transform_3(%arg0: i32) -> (i32, i32) {
    %c0_i32 = arith.constant 0 : i32
    %c0_i32_0 = arith.constant 0 : i32
    return %arg0, %c0_i32 : i32, i32
  }
}

</mosaic_0001>

<llo_original>
// kernel: forward.1
$region0: #{forward.1}
  #allocation0 [shape = 'u32[]', space=smem, size = 0x4, offset = 0x4, fixed_abs, tag = 'smem constant byte address 0x4 - core index']
  #allocation1 [shape = 'u32[144,128]{1,0:T(1,128)}', space=vmem, size = 0x12000, scoped, tag = 'internal scratch']
  %s0 = inlined_call_operand.vmem [shape: f32[8,16], index: 0, kind: input, shape index: {}]
  %s1 = inlined_call_operand.vmem [shape: f32[8,8], index: 1, kind: input, shape index: {}]
  %s2 = inlined_call_operand.hbm [shape: f32[416,128], index: 2, kind: input, shape index: {}]
  %s3 = inlined_call_operand.vmem [shape: f32[8,1], index: 3, kind: output, shape index: {}]
  %s4 = sld [smem:[#allocation0]]
  $region26: #{forward.1} parent=0
    _
  %s6 = ssub.s32 1, %s4
  %s7 = scalar_select 0, %s6, %s4
  $region1: #{forward.1} parent=0
    #allocation2 [shape = 'u8[212992]{0}', space=vmem, size = 0x34000, scoped, tag = 'input window, operand 2, single buffered']
    #allocation3 [shape = 's32[1]{0}', space=sflag, size = 0x4, scoped, tag = 'scoped memory for forward.1']
    %8 = vsyncpa [#allocation3], 0
    // Predicated region
    $region2: #{forward.1} parent=1 // pred_check
      _
    $region3: #{forward.1} parent=1 // pred_check_branch
      %10 = sbr.rel (0) target = $region5
    $region4: #{forward.1} parent=1 // pred_region
      _
    $region5: #{forward.1} parent=1 // pred_fallthru
      _
    // Predicated region
    $region6: #{forward.1} parent=1 // pred_check
      _
    $region7: #{forward.1} parent=1 // pred_check_branch
      %12 = sbr.rel (0) target = $region9
    $region8: #{forward.1} parent=1 // pred_region
      _
    $region9: #{forward.1} parent=1 // pred_fallthru
      _
    // Predicated region
    $region10: #{forward.1} parent=1 // pred_check
      _
    $region11: #{forward.1} parent=1 // pred_check_branch
      %14 = sbr.rel (0) target = $region13
    $region12: #{forward.1} parent=1 // pred_region
      %s16 = ssub.s32 6656, 6656
      %17 = vsyncadd [#allocation3], %s16
      %s18 = sshll.u32 [#allocation2], 4
      %s19 = int_to_ptr.vmem [resolvable:$true] %s18
      %24 = dma.hbm_to_vmem [thread:$0]  %s2, 6656, %s19, [#allocation3], 128, 128, 8
    $region13: #{forward.1} parent=1 // pred_fallthru
      _
    // Predicated region
    $region14: #{forward.1} parent=1 // pred_check
      _
    $region15: #{forward.1} parent=1 // pred_check_branch
      %26 = sbr.rel (0) target = $region17
    $region16: #{forward.1} parent=1 // pred_region
      %27 = dma.done [#allocation3], 6656
    $region17: #{forward.1} parent=1 // pred_fallthru
      _
    %v28 = vld [vmem:[#allocation2] sm:$0xff]
    %v29 = vld [vmem:[#allocation2 + $0x8] sm:$0xff]
    %v30 = vld [vmem:[#allocation2 + $0x10] sm:$0xff]
    %v31 = vld [vmem:[#allocation2 + $0x18] sm:$0xff]
    %v32 = vld [vmem:[#allocation2 + $0x20] sm:$0xff]
    %v33 = vld [vmem:[#allocation2 + $0x28] sm:$0xff]
    %v34 = vld [vmem:[#allocation2 + $0x30] sm:$0xff]
    %v35 = vld [vmem:[#allocation2 + $0x38] sm:$0xff]
    %v36 = vld [vmem:[#allocation2 + $0x40] sm:$0xff]
    %v37 = vld [vmem:[#allocation2 + $0x48] sm:$0xff]
    %v38 = vld [vmem:[#allocation2 + $0x50] sm:$0xff]
    %v39 = vld [vmem:[#allocation2 + $0x58] sm:$0xff]
    %v40 = vld [vmem:[#allocation2 + $0x60] sm:$0xff]
    %v41 = vld [vmem:[#allocation2 + $0x68] sm:$0xff]
    %v42 = vld [vmem:[#allocation2 + $0x70] sm:$0xff]
    %v43 = vld [vmem:[#allocation2 + $0x78] sm:$0xff]
    %v44 = vld [vmem:[#allocation2 + $0x80] sm:$0xff]
    %v45 = vld [vmem:[#allocation2 + $0x88] sm:$0xff]
    %v46 = vld [vmem:[#allocation2 + $0x90] sm:$0xff]
    %v47 = vld [vmem:[#allocation2 + $0x98] sm:$0xff]
    %v48 = vld [vmem:[#allocation2 + $0xa0] sm:$0xff]
    %v49 = vld [vmem:[#allocation2 + $0xa8] sm:$0xff]
    %v50 = vld [vmem:[#allocation2 + $0xb0] sm:$0xff]
    %v51 = vld [vmem:[#allocation2 + $0xb8] sm:$0xff]
    %v52 = vld [vmem:[#allocation2 + $0xc0] sm:$0xff]
    %v53 = vld [vmem:[#allocation2 + $0xc8] sm:$0xff]
    %v54 = vld [vmem:[#allocation2 + $0xd0] sm:$0xff]
    %v55 = vld [vmem:[#allocation2 + $0xd8] sm:$0xff]
    %v56 = vld [vmem:[#allocation2 + $0xe0] sm:$0xff]
    %v57 = vld [vmem:[#allocation2 + $0xe8] sm:$0xff]
    %v58 = vld [vmem:[#allocation2 + $0xf0] sm:$0xff]
    %v59 = vld [vmem:[#allocation2 + $0xf8] sm:$0xff]
    %v60 = vld [vmem:[#allocation2 + $0x100] sm:$0xff]
    %v61 = vld [vmem:[#allocation2 + $0x108] sm:$0xff]
    %v62 = vld [vmem:[#allocation2 + $0x110] sm:$0xff]
    %v63 = vld [vmem:[#allocation2 + $0x118] sm:$0xff]
    %v64 = vld [vmem:[#allocation2 + $0x120] sm:$0xff]
    %v65 = vld [vmem:[#allocation2 + $0x128] sm:$0xff]
    %v66 = vld [vmem:[#allocation2 + $0x130] sm:$0xff]
    %v67 = vld [vmem:[#allocation2 + $0x138] sm:$0xff]
    %v68 = vld [vmem:[#allocation2 + $0x140] sm:$0xff]
    %v69 = vld [vmem:[#allocation2 + $0x148] sm:$0xff]
    %v70 = vld [vmem:[#allocation2 + $0x150] sm:$0xff]
    %v71 = vld [vmem:[#allocation2 + $0x158] sm:$0xff]
    %v72 = vld [vmem:[#allocation2 + $0x160] sm:$0xff]
    %v73 = vld [vmem:[#allocation2 + $0x168] sm:$0xff]
    %v74 = vld [vmem:[#allocation2 + $0x170] sm:$0xff]
    %v75 = vld [vmem:[#allocation2 + $0x178] sm:$0xff]
    %v76 = vld [vmem:[#allocation2 + $0x180] sm:$0xff]
    %v77 = vld [vmem:[#allocation2 + $0x188] sm:$0xff]
    %v78 = vld [vmem:[#allocation2 + $0x190] sm:$0xff]
    %v79 = vld [vmem:[#allocation2 + $0x198] sm:$0xff]
    %vm80 = vcmask 1045509
    %v81 = vsel %vm80, %v79, -inf
    %82 = vmax.xlane.f32.xlu0 %v81
    %v83 = vpop.xlane.xlu0 %82
    %v84 = vld [vmem:[%s0] sm:$0xff]
    %v85 = vlaneseq
    %v86 = vshrl.u32 %v85, 7
    %v87 = vsub.s32 1, %v86
    %v88 = vrot.slane %v79, %v87
    %vm89 = vcmask 130048
    %v91 = vsel %vm89, %v84, 0
    %93 = vmatprep.subr.mxu0 0.0
    %94 = vmatpush1.msra.mxu0 0.0
    %95 = vmatprep.subr.mxu0 0.0
    %96 = vmatpush1.msra.mxu0 0.0
    %97 = vmatprep.subr.mxu0 0.0
    %98 = vmatpush1.msra.mxu0 0.0
    %99 = vmatprep.subr.mxu0 0.0
    %100 = vmatpush1.msra.mxu0 0.0
    %101 = vmatprep.subr.mxu0 0.0
    %102 = vmatpush1.msra.mxu0 0.0
    %103 = vmatprep.subr.mxu0 0.0
    %104 = vmatpush1.msra.mxu0 0.0
    %105 = vmatprep.subr.mxu0 0.0
    %106 = vmatpush1.msra.mxu0 0.0
    %107 = vmatprep.subr.mxu0 0.0
    %108 = vmatpush1.msra.mxu0 0.0
    %109 = vmatprep.subr.mxu0 0.0
    %110 = vmatpush1.msra.mxu0 0.0
    %111 = vmatprep.subr.mxu0 0.0
    %112 = vmatpush1.msra.mxu0 0.0
    %113 = vmatprep.subr.mxu0 0.0
    %114 = vmatpush1.msra.mxu0 0.0
    %115 = vmatprep.subr.mxu0 0.0
    %116 = vmatpush1.msra.mxu0 0.0
    %117 = vmatprep.subr.mxu0 0.0
    %118 = vmatpush1.msra.mxu0 0.0
    %119 = vmatprep.subr.mxu0 0.0
    %120 = vmatpush1.msra.mxu0 0.0
    %121 = vmatprep.subr.mxu0 0.0
    %122 = vmatpush1.msra.mxu0 %v29
    %123 = vmatprep.subr.mxu0 0.0
    %124 = vmatpush1.msra.mxu0 %v28
    %125 = vmatprep.subr.mxu0 0.0
    %126 = vmatpush2.msra.mxu0 0.0
    %127 = vmatprep.subr.mxu0 0.0
    %128 = vmatpush2.msra.mxu0 0.0
    %129 = vmatprep.subr.mxu0 0.0
    %130 = vmatpush2.msra.mxu0 0.0
    %131 = vmatprep.subr.mxu0 0.0
    %132 = vmatpush2.msra.mxu0 0.0
    %133 = vmatprep.subr.mxu0 0.0
    %134 = vmatpush2.msra.mxu0 0.0
    %135 = vmatprep.subr.mxu0 0.0
    %136 = vmatpush2.msra.mxu0 0.0
    %137 = vmatprep.subr.mxu0 0.0
    %138 = vmatpush2.msra.mxu0 0.0
    %139 = vmatprep.subr.mxu0 0.0
    %140 = vmatpush2.msra.mxu0 0.0
    %141 = vmatprep.subr.mxu0 0.0
    %142 = vmatpush2.msra.mxu0 0.0
    %143 = vmatprep.subr.mxu0 0.0
    %144 = vmatpush2.msra.mxu0 0.0
    %145 = vmatprep.subr.mxu0 0.0
    %146 = vmatpush2.msra.mxu0 0.0
    %147 = vmatprep.subr.mxu0 0.0
    %148 = vmatpush2.msra.mxu0 0.0
    %149 = vmatprep.subr.mxu0 0.0
    %150 = vmatpush2.msra.mxu0 0.0
    %151 = vmatprep.subr.mxu0 0.0
    %152 = vmatpush2.msra.mxu0 0.0
    %153 = vmatprep.subr.mxu0 0.0
    %154 = vmatpush2.msra.mxu0 0.0
    %155 = vmatprep.subr.mxu0 0.0
    %156 = vmatpush2.msra.mxu0 0.0
    %157 = vmatprep.mubr.f32.mxu0 0.0
    %158 = vmatmul.mubr.f32.gmra.mxu0 %v91
    %v159 = vpop.f32.mrf.mxu0
    %v160 = vadd.f32 %v88, %v159
    %v161 = vpop.f32.mrf.mxu0
    %162 = vdwg.mxu0
    %v163 = vmax.f32 %v160, 0.0
    %v164 = vld [vmem:[%s1] sm:$0xff]
    %vm165 = vcmask 64512
    %v167 = vsel %vm165, %v164, 0
    %169 = vmatprep.subr.mxu0 0.0
    %170 = vmatpush1.msra.mxu0 0.0
    %171 = vmatprep.subr.mxu0 0.0
    %172 = vmatpush1.msra.mxu0 0.0
    %173 = vmatprep.subr.mxu0 0.0
    %174 = vmatpush1.msra.mxu0 0.0
    %175 = vmatprep.subr.mxu0 0.0
    %176 = vmatpush1.msra.mxu0 0.0
    %177 = vmatprep.subr.mxu0 0.0
    %178 = vmatpush1.msra.mxu0 0.0
    %179 = vmatprep.subr.mxu0 0.0
    %180 = vmatpush1.msra.mxu0 0.0
    %181 = vmatprep.subr.mxu0 0.0
    %182 = vmatpush1.msra.mxu0 0.0
    %183 = vmatprep.subr.mxu0 0.0
    %184 = vmatpush1.msra.mxu0 0.0
    %185 = vmatprep.subr.mxu0 0.0
    %186 = vmatpush1.msra.mxu0 0.0
    %187 = vmatprep.subr.mxu0 0.0
    %188 = vmatpush1.msra.mxu0 0.0
    %189 = vmatprep.subr.mxu0 0.0
    %190 = vmatpush1.msra.mxu0 0.0
    %191 = vmatprep.subr.mxu0 0.0
    %192 = vmatpush1.msra.mxu0 0.0
    %193 = vmatprep.subr.mxu0 0.0
    %194 = vmatpush1.msra.mxu0 0.0
    %195 = vmatprep.subr.mxu0 0.0
    %196 = vmatpush1.msra.mxu0 0.0
    %197 = vmatprep.subr.mxu0 0.0
    %198 = vmatpush1.msra.mxu0 0.0
    %199 = vmatprep.subr.mxu0 0.0
    %200 = vmatpush1.msra.mxu0 %v46
    %201 = vmatprep.subr.mxu0 0.0
    %202 = vmatpush2.msra.mxu0 0.0
    %203 = vmatprep.subr.mxu0 0.0
    %204 = vmatpush2.msra.mxu0 0.0
    %205 = vmatprep.subr.mxu0 0.0
    %206 = vmatpush2.msra.mxu0 0.0
    %207 = vmatprep.subr.mxu0 0.0
    %208 = vmatpush2.msra.mxu0 0.0
    %209 = vmatprep.subr.mxu0 0.0
    %210 = vmatpush2.msra.mxu0 0.0
    %211 = vmatprep.subr.mxu0 0.0
    %212 = vmatpush2.msra.mxu0 0.0
    %213 = vmatprep.subr.mxu0 0.0
    %214 = vmatpush2.msra.mxu0 0.0
    %215 = vmatprep.subr.mxu0 0.0
    %216 = vmatpush2.msra.mxu0 0.0
    %217 = vmatprep.subr.mxu0 0.0
    %218 = vmatpush2.msra.mxu0 0.0
    %219 = vmatprep.subr.mxu0 0.0
    %220 = vmatpush2.msra.mxu0 0.0
    %221 = vmatprep.subr.mxu0 0.0
    %222 = vmatpush2.msra.mxu0 0.0
    %223 = vmatprep.subr.mxu0 0.0
    %224 = vmatpush2.msra.mxu0 0.0
    %225 = vmatprep.subr.mxu0 0.0
    %226 = vmatpush2.msra.mxu0 0.0
    %227 = vmatprep.subr.mxu0 0.0
    %228 = vmatpush2.msra.mxu0 0.0
    %229 = vmatprep.subr.mxu0 0.0
    %230 = vmatpush2.msra.mxu0 0.0
    %231 = vmatprep.subr.mxu0 0.0
    %232 = vmatpush2.msra.mxu0 0.0
    %233 = vmatprep.mubr.f32.mxu0 0.0
    %234 = vmatmul.mubr.f32.gmra.mxu0 %v167
    %v235 = vpop.f32.mrf.mxu0
    %v236 = vadd.f32 0.0, %v235
    %v237 = vpop.f32.mrf.mxu0
    %238 = vdwg.mxu0
    %239 = vmatprep.subr.mxu0 0.0
    %240 = vmatpush1.msra.mxu0 %v45
    %241 = vmatprep.subr.mxu0 0.0
    %242 = vmatpush1.msra.mxu0 %v44
    %243 = vmatprep.subr.mxu0 0.0
    %244 = vmatpush1.msra.mxu0 %v43
    %245 = vmatprep.subr.mxu0 0.0
    %246 = vmatpush1.msra.mxu0 %v42
    %247 = vmatprep.subr.mxu0 0.0
    %248 = vmatpush1.msra.mxu0 %v41
    %249 = vmatprep.subr.mxu0 0.0
    %250 = vmatpush1.msra.mxu0 %v40
    %251 = vmatprep.subr.mxu0 0.0
    %252 = vmatpush1.msra.mxu0 %v39
    %253 = vmatprep.subr.mxu0 0.0
    %254 = vmatpush1.msra.mxu0 %v38
    %255 = vmatprep.subr.mxu0 0.0
    %256 = vmatpush1.msra.mxu0 %v37
    %257 = vmatprep.subr.mxu0 0.0
    %258 = vmatpush1.msra.mxu0 %v36
    %259 = vmatprep.subr.mxu0 0.0
    %260 = vmatpush1.msra.mxu0 %v35
    %261 = vmatprep.subr.mxu0 0.0
    %262 = vmatpush1.msra.mxu0 %v34
    %263 = vmatprep.subr.mxu0 0.0
    %264 = vmatpush1.msra.mxu0 %v33
    %265 = vmatprep.subr.mxu0 0.0
    %266 = vmatpush1.msra.mxu0 %v32
    %267 = vmatprep.subr.mxu0 0.0
    %268 = vmatpush1.msra.mxu0 %v31
    %269 = vmatprep.subr.mxu0 0.0
    %270 = vmatpush1.msra.mxu0 %v30
    %271 = vmatprep.subr.mxu0 0.0
    %272 = vmatpush2.msra.mxu0 0.0
    %273 = vmatprep.subr.mxu0 0.0
    %274 = vmatpush2.msra.mxu0 0.0
    %275 = vmatprep.subr.mxu0 0.0
    %276 = vmatpush2.msra.mxu0 0.0
    %277 = vmatprep.subr.mxu0 0.0
    %278 = vmatpush2.msra.mxu0 0.0
    %279 = vmatprep.subr.mxu0 0.0
    %280 = vmatpush2.msra.mxu0 0.0
    %281 = vmatprep.subr.mxu0 0.0
    %282 = vmatpush2.msra.mxu0 0.0
    %283 = vmatprep.subr.mxu0 0.0
    %284 = vmatpush2.msra.mxu0 0.0
    %285 = vmatprep.subr.mxu0 0.0
    %286 = vmatpush2.msra.mxu0 0.0
    %287 = vmatprep.subr.mxu0 0.0
    %288 = vmatpush2.msra.mxu0 0.0
    %289 = vmatprep.subr.mxu0 0.0
    %290 = vmatpush2.msra.mxu0 0.0
    %291 = vmatprep.subr.mxu0 0.0
    %292 = vmatpush2.msra.mxu0 0.0
    %293 = vmatprep.subr.mxu0 0.0
    %294 = vmatpush2.msra.mxu0 0.0
    %295 = vmatprep.subr.mxu0 0.0
    %296 = vmatpush2.msra.mxu0 0.0
    %297 = vmatprep.subr.mxu0 0.0
    %298 = vmatpush2.msra.mxu0 0.0
    %299 = vmatprep.subr.mxu0 0.0
    %300 = vmatpush2.msra.mxu0 0.0
    %301 = vmatprep.subr.mxu0 0.0
    %302 = vmatpush2.msra.mxu0 0.0
    %303 = vmatprep.mubr.f32.mxu0 0.0
    %304 = vmatmul.mubr.f32.gmra.mxu0 %v163
    %v305 = vpop.f32.mrf.mxu0
    %v306 = vadd.f32 %v236, %v305
    %v307 = vpop.f32.mrf.mxu0
    %308 = vdwg.mxu0
    %v309 = vlaneseq
    %v310 = vshrl.u32 %v309, 7
    %v311 = vsub.s32 2, %v310
    %v312 = vrot.slane %v79, %v311
    %v313 = vadd.f32 %v306, %v312
    %v314 = vmax.f32 %v313, 0.0
    %v315 = vlaneseq
    %v316 = vshrl.u32 %v315, 7
    %v317 = vsub.s32 3, %v316
    %v318 = vrot.slane %v79, %v317
    %319 = vmatprep.subr.mxu0 0.0
    %320 = vmatpush1.msra.mxu0 %v62
    %321 = vmatprep.subr.mxu0 0.0
    %322 = vmatpush1.msra.mxu0 %v61
    %323 = vmatprep.subr.mxu0 0.0
    %324 = vmatpush1.msra.mxu0 %v60
    %325 = vmatprep.subr.mxu0 0.0
    %326 = vmatpush1.msra.mxu0 %v59
    %327 = vmatprep.subr.mxu0 0.0
    %328 = vmatpush1.msra.mxu0 %v58
    %329 = vmatprep.subr.mxu0 0.0
    %330 = vmatpush1.msra.mxu0 %v57
    %331 = vmatprep.subr.mxu0 0.0
    %332 = vmatpush1.msra.mxu0 %v56
    %333 = vmatprep.subr.mxu0 0.0
    %334 = vmatpush1.msra.mxu0 %v55
    %335 = vmatprep.subr.mxu0 0.0
    %336 = vmatpush1.msra.mxu0 %v54
    %337 = vmatprep.subr.mxu0 0.0
    %338 = vmatpush1.msra.mxu0 %v53
    %339 = vmatprep.subr.mxu0 0.0
    %340 = vmatpush1.msra.mxu0 %v52
    %341 = vmatprep.subr.mxu0 0.0
    %342 = vmatpush1.msra.mxu0 %v51
    %343 = vmatprep.subr.mxu0 0.0
    %344 = vmatpush1.msra.mxu0 %v50
    %345 = vmatprep.subr.mxu0 0.0
    %346 = vmatpush1.msra.mxu0 %v49
    %347 = vmatprep.subr.mxu0 0.0
    %348 = vmatpush1.msra.mxu0 %v48
    %349 = vmatprep.subr.mxu0 0.0
    %350 = vmatpush1.msra.mxu0 %v47
    %351 = vmatprep.subr.mxu0 0.0
    %352 = vmatpush2.msra.mxu0 0.0
    %353 = vmatprep.subr.mxu0 0.0
    %354 = vmatpush2.msra.mxu0 0.0
    %355 = vmatprep.subr.mxu0 0.0
    %356 = vmatpush2.msra.mxu0 0.0
    %357 = vmatprep.subr.mxu0 0.0
    %358 = vmatpush2.msra.mxu0 0.0
    %359 = vmatprep.subr.mxu0 0.0
    %360 = vmatpush2.msra.mxu0 0.0
    %361 = vmatprep.subr.mxu0 0.0
    %362 = vmatpush2.msra.mxu0 0.0
    %363 = vmatprep.subr.mxu0 0.0
    %364 = vmatpush2.msra.mxu0 0.0
    %365 = vmatprep.subr.mxu0 0.0
    %366 = vmatpush2.msra.mxu0 0.0
    %367 = vmatprep.subr.mxu0 0.0
    %368 = vmatpush2.msra.mxu0 0.0
    %369 = vmatprep.subr.mxu0 0.0
    %370 = vmatpush2.msra.mxu0 0.0
    %371 = vmatprep.subr.mxu0 0.0
    %372 = vmatpush2.msra.mxu0 0.0
    %373 = vmatprep.subr.mxu0 0.0
    %374 = vmatpush2.msra.mxu0 0.0
    %375 = vmatprep.subr.mxu0 0.0
    %376 = vmatpush2.msra.mxu0 0.0
    %377 = vmatprep.subr.mxu0 0.0
    %378 = vmatpush2.msra.mxu0 0.0
    %379 = vmatprep.subr.mxu0 0.0
    %380 = vmatpush2.msra.mxu0 0.0
    %381 = vmatprep.subr.mxu0 0.0
    %382 = vmatpush2.msra.mxu0 0.0
    %383 = vmatprep.mubr.f32.mxu0 0.0
    %384 = vmatmul.mubr.f32.gmra.mxu0 %v314
    %v385 = vpop.f32.mrf.mxu0
    %v386 = vadd.f32 %v318, %v385
    %v387 = vpop.f32.mrf.mxu0
    %388 = vdwg.mxu0
    %v389 = vmax.f32 %v386, 0.0
    %v390 = vlaneseq
    %v391 = vshrl.u32 %v390, 7
    %v392 = vsub.s32 4, %v391
    %v393 = vrot.slane %v79, %v392
    %394 = vmatprep.subr.mxu0 0.0
    %395 = vmatpush1.msra.mxu0 %v78
    %396 = vmatprep.subr.mxu0 0.0
    %397 = vmatpush1.msra.mxu0 %v77
    %398 = vmatprep.subr.mxu0 0.0
    %399 = vmatpush1.msra.mxu0 %v76
    %400 = vmatprep.subr.mxu0 0.0
    %401 = vmatpush1.msra.mxu0 %v75
    %402 = vmatprep.subr.mxu0 0.0
    %403 = vmatpush1.msra.mxu0 %v74
    %404 = vmatprep.subr.mxu0 0.0
    %405 = vmatpush1.msra.mxu0 %v73
    %406 = vmatprep.subr.mxu0 0.0
    %407 = vmatpush1.msra.mxu0 %v72
    %408 = vmatprep.subr.mxu0 0.0
    %409 = vmatpush1.msra.mxu0 %v71
    %410 = vmatprep.subr.mxu0 0.0
    %411 = vmatpush1.msra.mxu0 %v70
    %412 = vmatprep.subr.mxu0 0.0
    %413 = vmatpush1.msra.mxu0 %v69
    %414 = vmatprep.subr.mxu0 0.0
    %415 = vmatpush1.msra.mxu0 %v68
    %416 = vmatprep.subr.mxu0 0.0
    %417 = vmatpush1.msra.mxu0 %v67
    %418 = vmatprep.subr.mxu0 0.0
    %419 = vmatpush1.msra.mxu0 %v66
    %420 = vmatprep.subr.mxu0 0.0
    %421 = vmatpush1.msra.mxu0 %v65
    %422 = vmatprep.subr.mxu0 0.0
    %423 = vmatpush1.msra.mxu0 %v64
    %424 = vmatprep.subr.mxu0 0.0
    %425 = vmatpush1.msra.mxu0 %v63
    %426 = vmatprep.subr.mxu0 0.0
    %427 = vmatpush2.msra.mxu0 0.0
    %428 = vmatprep.subr.mxu0 0.0
    %429 = vmatpush2.msra.mxu0 0.0
    %430 = vmatprep.subr.mxu0 0.0
    %431 = vmatpush2.msra.mxu0 0.0
    %432 = vmatprep.subr.mxu0 0.0
    %433 = vmatpush2.msra.mxu0 0.0
    %434 = vmatprep.subr.mxu0 0.0
    %435 = vmatpush2.msra.mxu0 0.0
    %436 = vmatprep.subr.mxu0 0.0
    %437 = vmatpush2.msra.mxu0 0.0
    %438 = vmatprep.subr.mxu0 0.0
    %439 = vmatpush2.msra.mxu0 0.0
    %440 = vmatprep.subr.mxu0 0.0
    %441 = vmatpush2.msra.mxu0 0.0
    %442 = vmatprep.subr.mxu0 0.0
    %443 = vmatpush2.msra.mxu0 0.0
    %444 = vmatprep.subr.mxu0 0.0
    %445 = vmatpush2.msra.mxu0 0.0
    %446 = vmatprep.subr.mxu0 0.0
    %447 = vmatpush2.msra.mxu0 0.0
    %448 = vmatprep.subr.mxu0 0.0
    %449 = vmatpush2.msra.mxu0 0.0
    %450 = vmatprep.subr.mxu0 0.0
    %451 = vmatpush2.msra.mxu0 0.0
    %452 = vmatprep.subr.mxu0 0.0
    %453 = vmatpush2.msra.mxu0 0.0
    %454 = vmatprep.subr.mxu0 0.0
    %455 = vmatpush2.msra.mxu0 0.0
    %456 = vmatprep.subr.mxu0 0.0
    %457 = vmatpush2.msra.mxu0 0.0
    %458 = vmatprep.mubr.f32.mxu0 0.0
    %459 = vmatmul.mubr.f32.gmra.mxu0 %v389
    %v460 = vpop.f32.mrf.mxu0
    %v461 = vadd.f32 %v393, %v460
    %v462 = vpop.f32.mrf.mxu0
    %463 = vdwg.mxu0
    %v464 = vmax.f32 %v461, 0.0
    %v465 = vlaneseq
    %v466 = vshrl.u32 %v465, 7
    %v467 = vsub.s32 0, %v466
    %v468 = vrot.slane %v79, %v467
    %v469 = vmul.f32 %v464, %v468
    %470 = vadd.xlane.f32.xlu0 %v469
    %v471 = vpop.xlane.xlu0 %470
    %v472 = vlaneseq
    %v473 = vshrl.u32 %v472, 7
    %v474 = vsub.s32 5, %v473
    %v475 = vrot.slane %v83, %v474
    %v476 = vadd.f32 %v471, %v475
    %vm477 = vcmask 7168
    %478 = vst.msk [vmem:[%s3] sm:$0xff] %vm477, %v476
    // Predicated region
    $region18: #{forward.1} parent=1 // pred_check
      _
    $region19: #{forward.1} parent=1 // pred_check_branch
      %480 = sbr.rel (0) target = $region21
    $region20: #{forward.1} parent=1 // pred_region
      _
    $region21: #{forward.1} parent=1 // pred_fallthru
      _
    // Predicated region
    $region22: #{forward.1} parent=1 // pred_check
      _
    $region23: #{forward.1} parent=1 // pred_check_branch
      %482 = sbr.rel (0) target = $region25
    $region24: #{forward.1} parent=1 // pred_region
      _
    $region25: #{forward.1} parent=1 // pred_fallthru
      _
    %483 = vsyncpa [#allocation3], 1

</llo_original>
